<compile_context>
chip_gen: v5e
topology: v5e:2x2
jax: 0.10.0
libtpu: 0.0.40
codegen_flags: <defaults>
</compile_context>

<pallas_src>
import math

import jax
import jax.numpy as jnp
from jax import lax
from jax.experimental import pallas as pl
from jax.experimental.pallas import tpu as pltpu

_LANES = 128
_SUBLANES = 8
_MAX_CHUNK_ROWS = 256   # per-chunk slice height inside the kernel body


def _ceil_to(x, m):
    return -(-x // m) * m


def _default_max_rows_per_tile():
    # 2048 rows (1 MiB f32 block) amortizes the ~0.35us step overhead to
    # <10% on v5e/v6e; v7x's faster HBM wants 4096.
    try:
        kind = jax.devices()[0].device_kind.lower()
    except Exception:
        return 2048
    return 4096 if "v7" in kind else 2048


def _tile_rows_cap(max_rows_per_tile):
    if max_rows_per_tile is None:
        max_rows_per_tile = _default_max_rows_per_tile()
    return max(_SUBLANES, (int(max_rows_per_tile) // _SUBLANES) * _SUBLANES)


def padded_batch_size(batch, dim, *, max_rows_per_tile=None):
    """Smallest B_pad >= batch such that B_pad*dim flattens to (rows, 128)
    with rows a multiple of 8 and of the tile height transe_loss_pallas will
    pick -> the lane-dense reshape in the wrapper is a free bitcast."""
    tr_cap = _tile_rows_cap(max_rows_per_tile)
    q1 = (_SUBLANES * _LANES) // math.gcd(_SUBLANES * _LANES, dim)
    b1 = _ceil_to(batch, q1)
    rows1 = (b1 * dim) // _LANES
    if rows1 <= tr_cap:
        return b1
    tile_elems = tr_cap * _LANES
    q2 = tile_elems // math.gcd(tile_elems, dim)
    return _ceil_to(batch, q2)


def _transe_partial_kernel(h_ref, r_ref, tp_ref, tn_ref, o_ref):
    # Refs are lane-dense: inputs (tr, 128), output (8, 128).
    tr = h_ref.shape[0]
    chunk = _SUBLANES
    while chunk * 2 <= _MAX_CHUNK_ROWS and tr % (chunk * 2) == 0:
        chunk *= 2
    nchunks = tr // chunk

    def contrib_fold(h, r, tp, tn):
        hr = h + r
        pos = hr - tp
        neg = hr - tn
        # loss contribution: neg^2 - pos^2  (== -(pos^2 - neg^2)); pure VPU.
        c = neg * neg - pos * pos
        # Fold (chunk, 128) -> (8, 128) with vreg adds only; the single
        # cross-lane reduce happens once in JAX outside the kernel.
        return jnp.sum(c.reshape(chunk // _SUBLANES, _SUBLANES, _LANES), axis=0)

    if nchunks <= 16:
        # Short fully-unrolled chunk loop with static (free) ref slices.
        acc = jnp.zeros((_SUBLANES, _LANES), jnp.float32)
        for j in range(nchunks):
            lo, hi = j * chunk, (j + 1) * chunk
            acc = acc + contrib_fold(h_ref[lo:hi, :], r_ref[lo:hi, :],
                                     tp_ref[lo:hi, :], tn_ref[lo:hi, :])
        o_ref[...] = acc
    else:
        def body(i, acc):
            s = pl.ds(pl.multiple_of(i * chunk, chunk), chunk)
            return acc + contrib_fold(h_ref[s, :], r_ref[s, :],
                                      tp_ref[s, :], tn_ref[s, :])
        o_ref[...] = lax.fori_loop(
            0, nchunks, body, jnp.zeros((_SUBLANES, _LANES), jnp.float32))


def transe_loss_pallas(head_emb, rel_emb, pos_tail_emb, neg_tail_emb,
                       *, max_rows_per_tile=None):
    """loss = -(sum ||h+r-tp||^2 - sum ||h+r-tn||^2), computed in Pallas."""
    B, D = head_emb.shape
    n = B * D
    tr_cap = _tile_rows_cap(max_rows_per_tile)

    rows_min = _ceil_to(_ceil_to(n, _LANES) // _LANES, _SUBLANES)
    if rows_min <= tr_cap:
        tr = rows_min
        rows_padded = rows_min
    else:
        tr = tr_cap
        rows_padded = _ceil_to(rows_min, tr)
    total = rows_padded * _LANES
    num_tiles = rows_padded // tr

    def to_lane_dense(x):
        flat = x.astype(jnp.float32).reshape(-1)
        if total != n:
            # Safety net only: when the caller pads the *indices* (see
            # TransEPallas.forward / padded_batch_size) total == n and this
            # extra HBM pass never runs.
            flat = jnp.pad(flat, (0, total - n))
        return flat.reshape(rows_padded, _LANES)

    h, r, tp, tn = (to_lane_dense(x)
                    for x in (head_emb, rel_emb, pos_tail_emb, neg_tail_emb))

    in_spec = pl.BlockSpec((tr, _LANES), lambda i: (i, 0))
    out_spec = pl.BlockSpec((_SUBLANES, _LANES), lambda i: (i, 0))

    # 4 double-buffered input streams + output + elementwise scratch, with
    # 2x headroom; capped well below v7x's 64 MiB physical VMEM.
    tile_bytes = tr * _LANES * 4
    vmem_needed = (4 * 2 * tile_bytes
                   + 2 * _SUBLANES * _LANES * 4
                   + 6 * _MAX_CHUNK_ROWS * _LANES * 4)
    vmem_limit = int(min(48 * 1024 * 1024,
                         max(2 * vmem_needed, 16 * 1024 * 1024)))

    partials = pl.pallas_call(
        _transe_partial_kernel,
        out_shape=jax.ShapeDtypeStruct((num_tiles * _SUBLANES, _LANES),
                                       jnp.float32),
        grid=(num_tiles,),
        in_specs=[in_spec, in_spec, in_spec, in_spec],
        out_specs=out_spec,
        compiler_params=pltpu.CompilerParams(
            dimension_semantics=("parallel",),   # tiles independent -> megacore
            vmem_limit_bytes=vmem_limit),
    )(h, r, tp, tn)

    # Single final cross-lane/sublane reduction.
    return jnp.sum(partials)


class TransEPallas:
    def __init__(self, dim, n_entity, n_relation, key):
        k1, k2 = jax.random.split(key)
        # deterministic synthetic init (stand-in for torch.randn with seed 255)
        self.entity_embedding_matrix = jax.random.normal(
            k1, (n_entity, dim), dtype=jnp.float32)
        self.relation_embedding_matrix = jax.random.normal(
            k2, (n_relation, dim), dtype=jnp.float32)

    def forward(self, data, *, max_rows_per_tile=None):
        # data: (B, 4) int32  ->  [head, relation, pos_tail, neg_tail]
        data = jnp.asarray(data, dtype=jnp.int32)
        B = data.shape[0]
        D = self.entity_embedding_matrix.shape[1]
        B_pad = padded_batch_size(B, D, max_rows_per_tile=max_rows_per_tile)
        if B_pad != B:
            # Pad the *indices*, not the gathered slabs: [0,0,0,0] rows have
            # pos_tail == neg_tail, so their contribution is exactly 0, and
            # the gathered slabs come out already lane-aligned (no jnp.pad
            # HBM pass in the kernel wrapper).
            pad = jnp.zeros((B_pad - B, 4), dtype=data.dtype)
            data = jnp.concatenate([data, pad], axis=0)
        head = self.entity_embedding_matrix[data[:, 0]]
        rel = self.relation_embedding_matrix[data[:, 1]]
        pos_tail = self.entity_embedding_matrix[data[:, 2]]
        neg_tail = self.entity_embedding_matrix[data[:, 3]]
        return transe_loss_pallas(head, rel, pos_tail, neg_tail,
                                  max_rows_per_tile=max_rows_per_tile)

    # pure-JAX reference (mirrors the PyTorch forward exactly)
    def forward_ref(self, data):
        data = jnp.asarray(data, dtype=jnp.int32)
        head = self.entity_embedding_matrix[data[:, 0]]
        rel = self.relation_embedding_matrix[data[:, 1]]
        pos_tail = self.entity_embedding_matrix[data[:, 2]]
        neg_tail = self.entity_embedding_matrix[data[:, 3]]
        pos_scores = jnp.linalg.norm(head + rel - pos_tail, ord=2, axis=1)
        neg_scores = jnp.linalg.norm(head + rel - neg_tail, ord=2, axis=1)
        pos_scores = pos_scores * pos_scores
        neg_scores = neg_scores * neg_scores
        return -(pos_scores.sum() - neg_scores.sum())


def _make_data(key, batch, n_entity, n_relation):
    k_h, k_r, k_tp, k_tn = jax.random.split(key, 4)
    return jnp.stack(
        [
            jax.random.randint(k_h, (batch,), 0, n_entity),
            jax.random.randint(k_r, (batch,), 0, n_relation),
            jax.random.randint(k_tp, (batch,), 0, n_entity),
            jax.random.randint(k_tn, (batch,), 0, n_entity),
        ],
        axis=1,
    ).astype(jnp.int32)


if __name__ == "__main__":
    key = jax.random.PRNGKey(0)
    k_model1, k_data1, k_model2, k_data2 = jax.random.split(key, 4)

    # --- Test 1: small shapes consistent with the module (single tile) ---
    dim, n_entity, n_relation, batch = 32, 64, 8, 16
    model = TransEPallas(dim, n_entity, n_relation, k_model1)
    data = _make_data(k_data1, batch, n_entity, n_relation)

    loss = model.forward(data)
    jax.block_until_ready(loss)
    loss_ref = model.forward_ref(data)
    jax.block_until_ready(loss_ref)
    assert jnp.allclose(loss, loss_ref, rtol=1e-4, atol=1e-2), (loss, loss_ref)

    # --- Test 2: exercises multi-tile grid + index padding (D not /128) ---
    dim2, n_entity2, n_relation2, batch2 = 100, 300, 20, 48
    model2 = TransEPallas(dim2, n_entity2, n_relation2, k_model2)
    data2 = _make_data(k_data2, batch2, n_entity2, n_relation2)

    loss2 = model2.forward(data2, max_rows_per_tile=16)   # forces grid > 1
    jax.block_until_ready(loss2)
    loss2_ref = model2.forward_ref(data2)
    jax.block_until_ready(loss2_ref)
    assert jnp.allclose(loss2, loss2_ref, rtol=1e-3, atol=1e-1), (loss2, loss2_ref)

    print("KERNEL_OK")
</pallas_src>

<mosaic_0001>
module attributes {stable_mosaic.version = 11 : i64} {
  func.func @_transe_partial_kernel(%arg0: i32, %arg1: memref<8x128xf32, #tpu.memory_space<vmem>>, %arg2: memref<8x128xf32, #tpu.memory_space<vmem>>, %arg3: memref<8x128xf32, #tpu.memory_space<vmem>>, %arg4: memref<8x128xf32, #tpu.memory_space<vmem>>, %arg5: memref<8x128xf32, #tpu.memory_space<vmem>>) attributes {dimension_semantics = [#tpu.dimension_semantics<parallel>], iteration_bounds = array<i64: 1>, scalar_prefetch = 0 : i64, scratch_operands = 0 : i64, tpu.core_type = #tpu.core_type<tc>, window_params = [{transform_indices = @transform_0, window_bounds = array<i64: 8, 128>}, {transform_indices = @transform_1, window_bounds = array<i64: 8, 128>}, {transform_indices = @transform_2, window_bounds = array<i64: 8, 128>}, {transform_indices = @transform_3, window_bounds = array<i64: 8, 128>}, {transform_indices = @transform_4, window_bounds = array<i64: 8, 128>}]} {
    %cst = arith.constant 0.000000e+00 : f32
    %0 = vector.broadcast %cst : f32 to vector<8x128xf32>
    %c0 = arith.constant 0 : index
    %c0_0 = arith.constant 0 : index
    %1 = vector.load %arg1[%c0, %c0_0] : memref<8x128xf32, #tpu.memory_space<vmem>>, vector<8x128xf32>
    %c0_1 = arith.constant 0 : index
    %c0_2 = arith.constant 0 : index
    %2 = vector.load %arg2[%c0_1, %c0_2] : memref<8x128xf32, #tpu.memory_space<vmem>>, vector<8x128xf32>
    %c0_3 = arith.constant 0 : index
    %c0_4 = arith.constant 0 : index
    %3 = vector.load %arg3[%c0_3, %c0_4] : memref<8x128xf32, #tpu.memory_space<vmem>>, vector<8x128xf32>
    %c0_5 = arith.constant 0 : index
    %c0_6 = arith.constant 0 : index
    %4 = vector.load %arg4[%c0_5, %c0_6] : memref<8x128xf32, #tpu.memory_space<vmem>>, vector<8x128xf32>
    %5 = arith.addf %1, %2 : vector<8x128xf32>
    %6 = arith.subf %5, %3 : vector<8x128xf32>
    %7 = arith.subf %5, %4 : vector<8x128xf32>
    %8 = arith.mulf %7, %7 : vector<8x128xf32>
    %9 = arith.mulf %6, %6 : vector<8x128xf32>
    %10 = arith.subf %8, %9 : vector<8x128xf32>
    %11 = vector.shape_cast %10 : vector<8x128xf32> to vector<1x8x128xf32>
    %cst_7 = arith.constant dense<0.000000e+00> : vector<8x128xf32>
    %12 = vector.multi_reduction <add>, %11, %cst_7 [0] : vector<1x8x128xf32> to vector<8x128xf32>
    %13 = arith.addf %0, %12 : vector<8x128xf32>
    %c0_8 = arith.constant 0 : index
    %c0_9 = arith.constant 0 : index
    %14 = vector.load %arg5[%c0_8, %c0_9] : memref<8x128xf32, #tpu.memory_space<vmem>>, vector<8x128xf32>
    tpu.vector_store %arg5[%c0_8, %c0_9], %13 {strides = array<i32>} : memref<8x128xf32, #tpu.memory_space<vmem>>, vector<8x128xf32>,
    return
  }
  func.func @transform_0(%arg0: i32) -> (i32, i32) {
    %c0_i32 = arith.constant 0 : i32
    %c0_i32_0 = arith.constant 0 : i32
    return %arg0, %c0_i32 : i32, i32
  }
  func.func @transform_1(%arg0: i32) -> (i32, i32) {
    %c0_i32 = arith.constant 0 : i32
    %c0_i32_0 = arith.constant 0 : i32
    return %arg0, %c0_i32 : i32, i32
  }
  func.func @transform_2(%arg0: i32) -> (i32, i32) {
    %c0_i32 = arith.constant 0 : i32
    %c0_i32_0 = arith.constant 0 : i32
    return %arg0, %c0_i32 : i32, i32
  }
  func.func @transform_3(%arg0: i32) -> (i32, i32) {
    %c0_i32 = arith.constant 0 : i32
    %c0_i32_0 = arith.constant 0 : i32
    return %arg0, %c0_i32 : i32, i32
  }
  func.func @transform_4(%arg0: i32) -> (i32, i32) {
    %c0_i32 = arith.constant 0 : i32
    %c0_i32_0 = arith.constant 0 : i32
    return %arg0, %c0_i32 : i32, i32
  }
}

</mosaic_0001>

<llo_original>
// kernel: tpu_custom_call.1
$region0: #{tpu_custom_call.1}
  #allocation0 [shape = 'u32[]', space=smem, size = 0x4, offset = 0x4, fixed_abs, tag = 'smem constant byte address 0x4 - core index']
  #allocation1 [shape = 'u32[72,128]{1,0:T(1,128)}', space=vmem, size = 0x9000, scoped, tag = 'internal scratch']
  %s0 = inlined_call_operand.hbm [shape: f32[8,128], index: 0, kind: input, shape index: {}]
  %s1 = inlined_call_operand.hbm [shape: f32[8,128], index: 1, kind: input, shape index: {}]
  %s2 = inlined_call_operand.hbm [shape: f32[8,128], index: 2, kind: input, shape index: {}]
  %s3 = inlined_call_operand.hbm [shape: f32[8,128], index: 3, kind: input, shape index: {}]
  %s4 = inlined_call_operand.hbm [shape: f32[8,128], index: 4, kind: output, shape index: {}]
  %s5 = sld [smem:[#allocation0]]
  $region42: #{tpu_custom_call.1} parent=0
    _
  %s7 = ssub.s32 1, %s5
  %s8 = scalar_select 0, %s7, %s5
  $region1: #{tpu_custom_call.1} parent=0
    #allocation2 [shape = 'u8[4096]{0}', space=vmem, size = 0x1000, scoped, tag = 'input window, operand 0, single buffered']
    #allocation3 [shape = 's32[1]{0}', space=sflag, size = 0x4, scoped, tag = 'scoped memory for tpu_custom_call.1']
    #allocation4 [shape = 's32[1]{0}', space=sflag, size = 0x4, scoped, tag = 'scoped memory for tpu_custom_call.1']
    #allocation5 [shape = 'u8[4096]{0}', space=vmem, size = 0x1000, scoped, tag = 'input window, operand 1, single buffered']
    #allocation6 [shape = 's32[1]{0}', space=sflag, size = 0x4, scoped, tag = 'scoped memory for tpu_custom_call.1']
    #allocation7 [shape = 'u8[4096]{0}', space=vmem, size = 0x1000, scoped, tag = 'input window, operand 2, single buffered']
    #allocation8 [shape = 'u8[4096]{0}', space=vmem, size = 0x1000, scoped, tag = 'input window, operand 3, single buffered']
    #allocation9 [shape = 's32[1]{0}', space=sflag, size = 0x4, scoped, tag = 'scoped memory for tpu_custom_call.1']
    #allocation10 [shape = 'u8[4096]{0}', space=vmem, size = 0x1000, scoped, tag = 'output window, operand 0, single buffered']
    %9 = vsyncpa [#allocation3], 0
    %10 = vsyncpa [#allocation6], 0
    %11 = vsyncpa [#allocation9], 0
    %12 = vsyncpa [#allocation4], 0
    // Predicated region
    $region2: #{tpu_custom_call.1} parent=1 // pred_check
      _
    $region3: #{tpu_custom_call.1} parent=1 // pred_check_branch
      %14 = sbr.rel (0) target = $region5
    $region4: #{tpu_custom_call.1} parent=1 // pred_region
      %16 = vsyncadd [#allocation3], 0
      %s18 = sshll.u32 %s0, 4
      %s19 = int_to_ptr.hbm [resolvable:$true] %s18
      %s20 = sshll.u32 [#allocation2], 4
      %s21 = int_to_ptr.vmem [resolvable:$true] %s20
      %23 = dma.hbm_to_vmem [thread:$0]  %s19, 128, %s21, [#allocation3]
    $region5: #{tpu_custom_call.1} parent=1 // pred_fallthru
      _
    // Predicated region
    $region6: #{tpu_custom_call.1} parent=1 // pred_check
      _
    $region7: #{tpu_custom_call.1} parent=1 // pred_check_branch
      %25 = sbr.rel (0) target = $region9
    $region8: #{tpu_custom_call.1} parent=1 // pred_region
      %27 = vsyncadd [#allocation6], 0
      %s29 = sshll.u32 %s1, 4
      %s30 = int_to_ptr.hbm [resolvable:$true] %s29
      %s31 = sshll.u32 [#allocation5], 4
      %s32 = int_to_ptr.vmem [resolvable:$true] %s31
      %34 = dma.hbm_to_vmem [thread:$0]  %s30, 128, %s32, [#allocation6]
    $region9: #{tpu_custom_call.1} parent=1 // pred_fallthru
      _
    // Predicated region
    $region10: #{tpu_custom_call.1} parent=1 // pred_check
      _
    $region11: #{tpu_custom_call.1} parent=1 // pred_check_branch
      %36 = sbr.rel (0) target = $region13
    $region12: #{tpu_custom_call.1} parent=1 // pred_region
      %38 = vsyncadd [#allocation6], 0
      %s40 = sshll.u32 %s2, 4
      %s41 = int_to_ptr.hbm [resolvable:$true] %s40
      %s42 = sshll.u32 [#allocation7], 4
      %s43 = int_to_ptr.vmem [resolvable:$true] %s42
      %45 = dma.hbm_to_vmem [thread:$0]  %s41, 128, %s43, [#allocation6]
    $region13: #{tpu_custom_call.1} parent=1 // pred_fallthru
      _
    // Predicated region
    $region14: #{tpu_custom_call.1} parent=1 // pred_check
      _
    $region15: #{tpu_custom_call.1} parent=1 // pred_check_branch
      %47 = sbr.rel (0) target = $region17
    $region16: #{tpu_custom_call.1} parent=1 // pred_region
      %49 = vsyncadd [#allocation9], 0
      %s51 = sshll.u32 %s3, 4
      %s52 = int_to_ptr.hbm [resolvable:$true] %s51
      %s53 = sshll.u32 [#allocation8], 4
      %s54 = int_to_ptr.vmem [resolvable:$true] %s53
      %56 = dma.hbm_to_vmem [thread:$0]  %s52, 128, %s54, [#allocation9]
    $region17: #{tpu_custom_call.1} parent=1 // pred_fallthru
      _
    // Predicated region
    $region18: #{tpu_custom_call.1} parent=1 // pred_check
      _
    $region19: #{tpu_custom_call.1} parent=1 // pred_check_branch
      %58 = sbr.rel (0) target = $region21
    $region20: #{tpu_custom_call.1} parent=1 // pred_region
      %60 = dma.done [#allocation3], 128
    $region21: #{tpu_custom_call.1} parent=1 // pred_fallthru
      _
    // Predicated region
    $region22: #{tpu_custom_call.1} parent=1 // pred_check
      _
    $region23: #{tpu_custom_call.1} parent=1 // pred_check_branch
      %62 = sbr.rel (0) target = $region25
    $region24: #{tpu_custom_call.1} parent=1 // pred_region
      %64 = dma.done [#allocation6], 128
    $region25: #{tpu_custom_call.1} parent=1 // pred_fallthru
      _
    // Predicated region
    $region26: #{tpu_custom_call.1} parent=1 // pred_check
      _
    $region27: #{tpu_custom_call.1} parent=1 // pred_check_branch
      %66 = sbr.rel (0) target = $region29
    $region28: #{tpu_custom_call.1} parent=1 // pred_region
      %68 = dma.done [#allocation6], 128
    $region29: #{tpu_custom_call.1} parent=1 // pred_fallthru
      _
    // Predicated region
    $region30: #{tpu_custom_call.1} parent=1 // pred_check
      _
    $region31: #{tpu_custom_call.1} parent=1 // pred_check_branch
      %70 = sbr.rel (0) target = $region33
    $region32: #{tpu_custom_call.1} parent=1 // pred_region
      %72 = dma.done [#allocation9], 128
    $region33: #{tpu_custom_call.1} parent=1 // pred_fallthru
      _
    %v73 = vld [vmem:[#allocation2] sm:$0xff]
    %v74 = vld [vmem:[#allocation5] sm:$0xff]
    %v75 = vld [vmem:[#allocation7] sm:$0xff]
    %v76 = vld [vmem:[#allocation8] sm:$0xff]
    %v77 = vadd.f32 %v73, %v74
    %v78 = vsub.f32 %v77, %v75
    %v79 = vsub.f32 %v77, %v76
    %v80 = vmul.f32 %v79, %v79
    %v81 = vmul.f32 %v78, %v78
    %v82 = vsub.f32 %v80, %v81
    %v83 = vadd.f32 %v82, 0.0
    %v84 = vadd.f32 %v83, 0.0
    %85 = vst [vmem:[#allocation10] sm:$0xff] %v84
    // Predicated region
    $region34: #{tpu_custom_call.1} parent=1 // pred_check
      _
    $region35: #{tpu_custom_call.1} parent=1 // pred_check_branch
      %87 = sbr.rel (0) target = $region37
    $region36: #{tpu_custom_call.1} parent=1 // pred_region
      %89 = vsyncadd [#allocation4], 0
      %s91 = sshll.u32 [#allocation10], 4
      %s92 = int_to_ptr.vmem [resolvable:$true] %s91
      %s93 = sshll.u32 %s4, 4
      %s94 = int_to_ptr.hbm [resolvable:$true] %s93
      %96 = dma.vmem_to_hbm [thread:$0]  %s92, 128, %s94, [#allocation4]
    $region37: #{tpu_custom_call.1} parent=1 // pred_fallthru
      _
    // Predicated region
    $region38: #{tpu_custom_call.1} parent=1 // pred_check
      _
    $region39: #{tpu_custom_call.1} parent=1 // pred_check_branch
      %98 = sbr.rel (0) target = $region41
    $region40: #{tpu_custom_call.1} parent=1 // pred_region
      %100 = dma.done [#allocation4], 128
    $region41: #{tpu_custom_call.1} parent=1 // pred_fallthru
      _
    %101 = vsyncpa [#allocation3], 1
    %102 = vsyncpa [#allocation6], 1
    %103 = vsyncpa [#allocation9], 1
    %104 = vsyncpa [#allocation4], 1

</llo_original>
